<compile_context>
chip_gen: v7x
topology: tpu7x:2x2x1
jax: 0.10.0
libtpu: 0.0.40
codegen_flags: <defaults>
</compile_context>

<pallas_src>
import jax
import jax.numpy as jnp
from jax import lax
from jax.experimental import pallas as pl
from jax.experimental.pallas import tpu as pltpu

_LANE = 128
_SUBLANE = 8


def _device_info():
    """Returns (scoped-VMEM budget in bytes, TensorCores per chip)."""
    try:
        kind = jax.devices()[0].device_kind.lower()
    except Exception:
        kind = ""
    if "v5e" in kind or "v5 lite" in kind or "v5lite" in kind:
        vmem = 16 << 20            # v5e scoped-VMEM default
    else:
        vmem = 32 << 20            # v6e / v7x scoped-VMEM default
    n_cores = 2 if ("v7" in kind or "tpu7" in kind) else 1   # v7x: 2 TCs / chip
    return vmem, n_cores


def _make_elbo_kernel(n_src, inv_bd, inv_b, *, tile_axis, block_shape,
                      data_shape, tiles_per_chunk, need_mask):
    """Build the kernel. All closure values are Python natives (no traced consts).

    Trailing-arg layout after the two mixture refs:
      [mu_0..mu_{n-1}, lv_0..lv_{n-1}, logits_0..logits_{n-1}, y_0..y_{n-1},
       out_ref, acc_ref]
    """
    block_r, block_c = block_shape
    r_tot, c_tot = data_shape

    def kernel(x_ref, xr_ref, *args):
        mu_refs = args[0:n_src]
        lv_refs = args[n_src:2 * n_src]
        logit_refs = args[2 * n_src:3 * n_src]
        y_refs = args[3 * n_src:4 * n_src]
        out_ref = args[4 * n_src]
        acc_ref = args[4 * n_src + 1]

        c = pl.program_id(0)   # chunk (parallel -> split over TCs on v7x)
        k = pl.program_id(1)   # tile within the chunk (reduction axis)

        # ---- init the per-chunk accumulator ----
        @pl.when(k == 0)
        def _():
            acc_ref[...] = jnp.zeros_like(acc_ref)

        # ---- steady state: elementwise squared error, pure VPU adds ----
        d = xr_ref[...].astype(jnp.float32) - x_ref[...].astype(jnp.float32)
        if need_mask:
            step = c * tiles_per_chunk + k
            if tile_axis == 0:
                base = step * block_r
                idx = base + lax.broadcasted_iota(jnp.int32, (block_r, block_c), 0)
                mask = idx < r_tot
            else:
                base = step * block_c
                idx = base + lax.broadcasted_iota(jnp.int32, (block_r, block_c), 1)
                mask = idx < c_tot
            d = jnp.where(mask, d, 0.0)
        acc_ref[...] += d * d

        # ---- finalize: one cross-lane reduction + tiny KL / CE terms ----
        @pl.when(k == pl.num_programs(1) - 1)
        def _():
            partial = jnp.sum(acc_ref[...]) * inv_bd

            @pl.when(c == 0)   # KL/CE owned by chunk 0 only (others skip the work)
            def _():
                pitch = 0.0
                kl = 0.0
                for s in range(n_src):
                    mu = mu_refs[s][...].astype(jnp.float32)          # (B, L)
                    lv = lv_refs[s][...].astype(jnp.float32)          # (B, L)
                    kl += -0.5 * jnp.sum(1.0 + lv - mu * mu - jnp.exp(lv))

                    logits = logit_refs[s][...].astype(jnp.float32)   # (B, C)
                    y = y_refs[s][...]                                # (B, 1) int32
                    m = jnp.max(logits, axis=-1, keepdims=True)
                    lse = m + jnp.log(
                        jnp.sum(jnp.exp(logits - m), axis=-1, keepdims=True))
                    cls = lax.broadcasted_iota(jnp.int32, logits.shape, 1)
                    sel = jnp.sum(jnp.where(cls == y, logits, 0.0),
                                  axis=-1, keepdims=True)
                    pitch += jnp.mean(lse - sel)
                out_ref[...] = jnp.zeros(out_ref.shape, jnp.float32) + (
                    partial + pitch + kl * inv_b)

            @pl.when(c != 0)
            def _():
                out_ref[...] = jnp.zeros(out_ref.shape, jnp.float32) + partial

    return kernel


def elbo_loss(x_m, x_m_recon, tau_means, tau_logvars, nu_logits, y_pitch,
              *, max_block_bytes=None, force_chunks=None):
    """tau_means/tau_logvars/nu_logits/y_pitch: python lists (one entry per source).

    max_block_bytes / force_chunks are test hooks to exercise tiling/masking/chunk
    paths at small shapes; leave as None in production.
    """
    n_src = len(tau_means)
    B, D = x_m.shape
    N = B * D
    in_item = x_m.dtype.itemsize

    vmem_budget, n_cores = _device_info()
    want_chunks = force_chunks if force_chunks is not None else n_cores

    # ---- byte-budgeted block size ----
    # Resident recon footprint per data element:
    #   2 inputs x 2 pipeline buffers x in_item  +  4 B of f32 accumulator.
    budget = int(0.8 * vmem_budget)                    # leave headroom
    max_elems = budget // (4 * in_item + 4)
    max_elems = min(max_elems, (4 << 20) // in_item)   # ~4 MiB/input block sweet spot
    if max_block_bytes is not None:                    # test hook: force tiny tiles
        max_elems = max(_SUBLANE * _LANE, max_block_bytes // in_item)

    # ---- sublane-filled layout: view (B, D) as (rows, W) when B < 8 ----
    # sum((xr - x)^2) is invariant to any reshape of the flat B*D elements.
    x, xr = x_m, x_m_recon
    tile_axis = 1
    if B < _SUBLANE:
        for W in (1024, 896, 768, 640, 512, 384, 256, 128):
            if D % W == 0 and (N // W) >= _SUBLANE:
                x = x_m.reshape(N // W, W)
                xr = x_m_recon.reshape(N // W, W)
                tile_axis = 0
                break
    R, C = x.shape

    # ---- pick the tile along one axis; ragged tail is masked in-kernel (no pad) ----
    if tile_axis == 1:                       # tile along columns (feature dim)
        full = (R * C <= max_elems) or (C <= _LANE)
        if full:
            block_r, block_c = R, C
        else:
            block_c = max(_LANE, ((max_elems // R) // _LANE) * _LANE)
            block_c = min(block_c, pl.cdiv(C, _LANE) * _LANE)
            block_r = R
        total_tiles = 1 if full else pl.cdiv(C, block_c)
        extent, block_t = C, block_c
    else:                                    # tile along rows (sublane-filled slab)
        full = (R * C <= max_elems) or (R <= _SUBLANE)
        if full:
            block_r, block_c = R, C
        else:
            block_r = max(_SUBLANE, ((max_elems // C) // _SUBLANE) * _SUBLANE)
            block_r = min(block_r, pl.cdiv(R, _SUBLANE) * _SUBLANE)
            block_c = C
        total_tiles = 1 if full else pl.cdiv(R, block_r)
        extent, block_t = R, block_r

    n_chunks = 1 if full else max(1, min(want_chunks, total_tiles))
    tiles_per_chunk = pl.cdiv(total_tiles, n_chunks)
    need_mask = (n_chunks * tiles_per_chunk * block_t) != extent

    # labels as (B, 1) int32 (2-D, lane axis last)
    ys = [jnp.reshape(y, (B, 1)).astype(jnp.int32) for y in y_pitch]
    latents = list(tau_means) + list(tau_logvars) + list(nu_logits) + ys

    if tile_axis == 1:
        data_map = lambda c, k: (0, c * tiles_per_chunk + k)
    else:
        data_map = lambda c, k: (c * tiles_per_chunk + k, 0)
    data_spec = pl.BlockSpec((block_r, block_c), data_map)

    def _const_spec(arr):
        # whole (tiny) array resident; constant block index -> copied in once
        return pl.BlockSpec(arr.shape, lambda c, k: (0, 0))

    in_specs = [data_spec, data_spec] + [_const_spec(a) for a in latents]
    out_specs = pl.BlockSpec((_SUBLANE, _LANE), lambda c, k: (c, 0))
    out_shape = jax.ShapeDtypeStruct((_SUBLANE * n_chunks, _LANE), jnp.float32)

    L = tau_means[0].shape[-1]
    Cn = nu_logits[0].shape[-1]
    bytes_accessed = int((x.size + xr.size) * in_item
                         + sum(a.size * a.dtype.itemsize for a in latents)
                         + _SUBLANE * n_chunks * _LANE * 4)
    cost = pl.CostEstimate(
        flops=int(3 * N + n_src * B * (8 * L + 6 * Cn)),
        transcendentals=int(n_src * B * (L + Cn + 1)),
        bytes_accessed=bytes_accessed,
    )

    kernel = _make_elbo_kernel(
        n_src, 1.0 / N, 1.0 / B,
        tile_axis=tile_axis, block_shape=(block_r, block_c),
        data_shape=(R, C), tiles_per_chunk=tiles_per_chunk, need_mask=need_mask)

    out = pl.pallas_call(
        kernel,
        out_shape=out_shape,
        grid_spec=pltpu.PrefetchScalarGridSpec(
            num_scalar_prefetch=0,
            grid=(n_chunks, tiles_per_chunk),
            in_specs=in_specs,
            out_specs=out_specs,
            scratch_shapes=[pltpu.VMEM((block_r, block_c), jnp.float32)],
        ),
        # TODO(synk): on v7x, verify via a trace that "parallel" actually shards the
        # chunk axis across both TensorCores; switch to pltpu.CORE_PARALLEL if not.
        compiler_params=pltpu.CompilerParams(
            dimension_semantics=("parallel", "arbitrary"),
            vmem_limit_bytes=vmem_budget),
        cost_estimate=cost,
    )(x, xr, *latents)

    # one scalar partial per chunk lives at [c*8, 0]; tiny cross-chunk sum in XLA
    return jnp.sum(out.reshape(n_chunks, _SUBLANE, _LANE)[:, 0, 0])


if __name__ == "__main__":
    key = jax.random.PRNGKey(0)

    def make_inputs(key, B, D, N_s, L, C):
        ks = jax.random.split(key, 2 + 4 * N_s)
        x_m = jax.random.normal(ks[0], (B, D), jnp.float32)
        x_m_recon = jax.random.normal(ks[1], (B, D), jnp.float32)
        tau_means, tau_logvars, nu_logits, y_pitch = [], [], [], []
        for s in range(N_s):
            tau_means.append(jax.random.normal(ks[2 + 4 * s], (B, L), jnp.float32))
            tau_logvars.append(0.1 * jax.random.normal(ks[3 + 4 * s], (B, L), jnp.float32))
            nu_logits.append(jax.random.normal(ks[4 + 4 * s], (B, C), jnp.float32))
            y_pitch.append(jax.random.randint(ks[5 + 4 * s], (B,), 0, C, jnp.int32))
        return x_m, x_m_recon, tau_means, tau_logvars, nu_logits, y_pitch

    def ref_loss(x_m, x_m_recon, tau_means, tau_logvars, nu_logits, y_pitch):
        recon = jnp.mean((x_m_recon - x_m) ** 2)
        pitch = 0.0
        for lg, y in zip(nu_logits, y_pitch):
            logp = jax.nn.log_softmax(lg, axis=-1)
            pitch += jnp.mean(-jnp.take_along_axis(logp, y[:, None], axis=-1)[:, 0])
        kl = 0.0
        for m_, lv_ in zip(tau_means, tau_logvars):
            kl += -0.5 * jnp.sum(1 + lv_ - m_ ** 2 - jnp.exp(lv_))
        return recon + pitch + kl / x_m.shape[0]

    # Case 1: tiny -> single full block, no grid, no mask.
    # Case 2: B<8 -> sublane-filled slab layout, forced small tiles -> ragged-row mask.
    # Case 3: B>=8 -> direct (B, tile_d) tiling, ragged-column mask, 2 chunk partials.
    cases = [
        (2, 32, 3, 16, 16, {}),
        (2, 1280, 3, 16, 16, dict(max_block_bytes=4096)),
        (16, 1000, 2, 8, 24, dict(max_block_bytes=16384, force_chunks=2)),
    ]
    for i, (B, D, N_s, L, C, kw) in enumerate(cases):
        key, sub = jax.random.split(key)
        args = make_inputs(sub, B, D, N_s, L, C)
        loss = elbo_loss(*args, **kw)
        jax.block_until_ready(loss)
        ref = ref_loss(*args)
        assert jnp.allclose(loss, ref, rtol=1e-4, atol=1e-4), (i, float(loss), float(ref))

    print("KERNEL_OK")
</pallas_src>

<mosaic_0001>
module attributes {stable_mosaic.version = 11 : i64} {
  func.func @kernel(%arg0: i32, %arg1: i32, %arg2: memref<2x32xf32, #tpu.memory_space<vmem>>, %arg3: memref<2x32xf32, #tpu.memory_space<vmem>>, %arg4: memref<2x16xf32, #tpu.memory_space<vmem>>, %arg5: memref<2x16xf32, #tpu.memory_space<vmem>>, %arg6: memref<2x16xf32, #tpu.memory_space<vmem>>, %arg7: memref<2x16xf32, #tpu.memory_space<vmem>>, %arg8: memref<2x16xf32, #tpu.memory_space<vmem>>, %arg9: memref<2x16xf32, #tpu.memory_space<vmem>>, %arg10: memref<2x16xf32, #tpu.memory_space<vmem>>, %arg11: memref<2x16xf32, #tpu.memory_space<vmem>>, %arg12: memref<2x16xf32, #tpu.memory_space<vmem>>, %arg13: memref<2x1xi32, #tpu.memory_space<vmem>>, %arg14: memref<2x1xi32, #tpu.memory_space<vmem>>, %arg15: memref<2x1xi32, #tpu.memory_space<vmem>>, %arg16: memref<8x128xf32, #tpu.memory_space<vmem>>, %arg17: memref<2x32xf32, #tpu.memory_space<vmem>>) attributes {dimension_semantics = [#tpu.dimension_semantics<parallel>, #tpu.dimension_semantics<arbitrary>], iteration_bounds = array<i64: 1, 1>, scalar_prefetch = 0 : i64, scratch_operands = 1 : i64, tpu.core_type = #tpu.core_type<tc>, window_params = [{transform_indices = @transform_0, window_bounds = array<i64: 2, 32>}, {transform_indices = @transform_1, window_bounds = array<i64: 2, 32>}, {pipeline_mode = #tpu.pipeline_mode<synchronous>, transform_indices = @transform_2, window_bounds = array<i64: 2, 16>}, {pipeline_mode = #tpu.pipeline_mode<synchronous>, transform_indices = @transform_3, window_bounds = array<i64: 2, 16>}, {pipeline_mode = #tpu.pipeline_mode<synchronous>, transform_indices = @transform_4, window_bounds = array<i64: 2, 16>}, {pipeline_mode = #tpu.pipeline_mode<synchronous>, transform_indices = @transform_5, window_bounds = array<i64: 2, 16>}, {pipeline_mode = #tpu.pipeline_mode<synchronous>, transform_indices = @transform_6, window_bounds = array<i64: 2, 16>}, {pipeline_mode = #tpu.pipeline_mode<synchronous>, transform_indices = @transform_7, window_bounds = array<i64: 2, 16>}, {pipeline_mode = #tpu.pipeline_mode<synchronous>, transform_indices = @transform_8, window_bounds = array<i64: 2, 16>}, {pipeline_mode = #tpu.pipeline_mode<synchronous>, transform_indices = @transform_9, window_bounds = array<i64: 2, 16>}, {pipeline_mode = #tpu.pipeline_mode<synchronous>, transform_indices = @transform_10, window_bounds = array<i64: 2, 16>}, {pipeline_mode = #tpu.pipeline_mode<synchronous>, transform_indices = @transform_11, window_bounds = array<i64: 2, 1>}, {pipeline_mode = #tpu.pipeline_mode<synchronous>, transform_indices = @transform_12, window_bounds = array<i64: 2, 1>}, {pipeline_mode = #tpu.pipeline_mode<synchronous>, transform_indices = @transform_13, window_bounds = array<i64: 2, 1>}, {transform_indices = @transform_14, window_bounds = array<i64: 8, 128>}]} {
    %c0_i32 = arith.constant 0 : i32
    %0 = arith.cmpi eq, %arg1, %c0_i32 : i32
    %1 = arith.extui %0 : i1 to i32
    %c0_i32_0 = arith.constant 0 : i32
    %2 = arith.cmpi ne, %1, %c0_i32_0 : i32
    scf.if %2 {
      %cst = arith.constant 0.000000e+00 : f32
      %13 = vector.broadcast %cst : f32 to vector<2x32xf32>
      %c0_10 = arith.constant 0 : index
      %c0_11 = arith.constant 0 : index
      %14 = vector.load %arg17[%c0_10, %c0_11] : memref<2x32xf32, #tpu.memory_space<vmem>>, vector<2x32xf32>
      tpu.vector_store %arg17[%c0_10, %c0_11], %13 {strides = array<i32>} : memref<2x32xf32, #tpu.memory_space<vmem>>, vector<2x32xf32>,
    } else {
    }
    %c0 = arith.constant 0 : index
    %c0_1 = arith.constant 0 : index
    %3 = vector.load %arg3[%c0, %c0_1] : memref<2x32xf32, #tpu.memory_space<vmem>>, vector<2x32xf32>
    %c0_2 = arith.constant 0 : index
    %c0_3 = arith.constant 0 : index
    %4 = vector.load %arg2[%c0_2, %c0_3] : memref<2x32xf32, #tpu.memory_space<vmem>>, vector<2x32xf32>
    %5 = arith.subf %3, %4 : vector<2x32xf32>
    %c0_4 = arith.constant 0 : index
    %c0_5 = arith.constant 0 : index
    %6 = vector.load %arg17[%c0_4, %c0_5] : memref<2x32xf32, #tpu.memory_space<vmem>>, vector<2x32xf32>
    %7 = arith.mulf %5, %5 : vector<2x32xf32>
    %8 = arith.addf %6, %7 : vector<2x32xf32>
    %c0_6 = arith.constant 0 : index
    %c0_7 = arith.constant 0 : index
    %9 = vector.load %arg17[%c0_6, %c0_7] : memref<2x32xf32, #tpu.memory_space<vmem>>, vector<2x32xf32>
    tpu.vector_store %arg17[%c0_6, %c0_7], %8 {strides = array<i32>} : memref<2x32xf32, #tpu.memory_space<vmem>>, vector<2x32xf32>,
    %c0_i32_8 = arith.constant 0 : i32
    %10 = arith.cmpi eq, %arg1, %c0_i32_8 : i32
    %11 = arith.extui %10 : i1 to i32
    %c0_i32_9 = arith.constant 0 : i32
    %12 = arith.cmpi ne, %11, %c0_i32_9 : i32
    scf.if %12 {
      %c0_10 = arith.constant 0 : index
      %c0_11 = arith.constant 0 : index
      %13 = vector.load %arg17[%c0_10, %c0_11] : memref<2x32xf32, #tpu.memory_space<vmem>>, vector<2x32xf32>
      %14 = vector.shape_cast %13 : vector<2x32xf32> to vector<1x2x32xf32>
      %cst = arith.constant dense<0.000000e+00> : vector<1xf32>
      %15 = vector.multi_reduction <add>, %14, %cst [1, 2] : vector<1x2x32xf32> to vector<1xf32>
      %16 = vector.shape_cast %15 : vector<1xf32> to vector<1x1x1xf32>
      %17 = vector.extract %16[0, 0, 0] : f32 from vector<1x1x1xf32>
      %cst_12 = arith.constant 1.562500e-02 : f32
      %18 = arith.mulf %17, %cst_12 : f32
      %c0_i32_13 = arith.constant 0 : i32
      %19 = arith.cmpi eq, %arg0, %c0_i32_13 : i32
      %20 = arith.extui %19 : i1 to i32
      %c0_i32_14 = arith.constant 0 : i32
      %21 = arith.cmpi ne, %20, %c0_i32_14 : i32
      scf.if %21 {
        %c0_17 = arith.constant 0 : index
        %c0_18 = arith.constant 0 : index
        %25 = vector.load %arg4[%c0_17, %c0_18] : memref<2x16xf32, #tpu.memory_space<vmem>>, vector<2x16xf32>
        %c0_19 = arith.constant 0 : index
        %c0_20 = arith.constant 0 : index
        %26 = vector.load %arg7[%c0_19, %c0_20] : memref<2x16xf32, #tpu.memory_space<vmem>>, vector<2x16xf32>
        %cst_21 = arith.constant 1.000000e+00 : f32
        %27 = vector.broadcast %cst_21 : f32 to vector<2x16xf32>
        %28 = arith.addf %27, %26 : vector<2x16xf32>
        %29 = arith.mulf %25, %25 : vector<2x16xf32>
        %30 = arith.subf %28, %29 : vector<2x16xf32>
        %31 = math.exp %26 : vector<2x16xf32>
        %32 = arith.subf %30, %31 : vector<2x16xf32>
        %33 = vector.shape_cast %32 : vector<2x16xf32> to vector<1x2x16xf32>
        %cst_22 = arith.constant dense<0.000000e+00> : vector<1xf32>
        %34 = vector.multi_reduction <add>, %33, %cst_22 [1, 2] : vector<1x2x16xf32> to vector<1xf32>
        %35 = vector.shape_cast %34 : vector<1xf32> to vector<1x1x1xf32>
        %36 = vector.extract %35[0, 0, 0] : f32 from vector<1x1x1xf32>
        %cst_23 = arith.constant -5.000000e-01 : f32
        %37 = arith.mulf %cst_23, %36 : f32
        %cst_24 = arith.constant 0.000000e+00 : f32
        %38 = arith.addf %cst_24, %37 : f32
        %c0_25 = arith.constant 0 : index
        %c0_26 = arith.constant 0 : index
        %39 = vector.load %arg10[%c0_25, %c0_26] : memref<2x16xf32, #tpu.memory_space<vmem>>, vector<2x16xf32>
        %c0_27 = arith.constant 0 : index
        %c0_28 = arith.constant 0 : index
        %40 = vector.load %arg13[%c0_27, %c0_28] : memref<2x1xi32, #tpu.memory_space<vmem>>, vector<2x1xi32>
        %cst_29 = arith.constant dense<0xFF800000> : vector<2xf32>
        %41 = vector.multi_reduction <maximumf>, %39, %cst_29 [1] : vector<2x16xf32> to vector<2xf32>
        %42 = vector.shape_cast %41 : vector<2xf32> to vector<2x1xf32>
        %43 = vector.broadcast %42 : vector<2x1xf32> to vector<2x16xf32>
        %44 = arith.subf %39, %43 : vector<2x16xf32>
        %45 = math.exp %44 : vector<2x16xf32>
        %cst_30 = arith.constant dense<0.000000e+00> : vector<2xf32>
        %46 = vector.multi_reduction <add>, %45, %cst_30 [1] : vector<2x16xf32> to vector<2xf32>
        %47 = vector.shape_cast %46 : vector<2xf32> to vector<2x1xf32>
        %48 = math.log %47 : vector<2x1xf32>
        %49 = arith.addf %42, %48 : vector<2x1xf32>
        %50 = tpu.iota {dimensions = array<i32: 1>} : vector<2x16xi32>
        %51 = vector.broadcast %40 : vector<2x1xi32> to vector<2x16xi32>
        %52 = arith.cmpi eq, %50, %51 : vector<2x16xi32>
        %cst_31 = arith.constant 0.000000e+00 : f32
        %53 = vector.broadcast %cst_31 : f32 to vector<2x16xf32>
        %54 = arith.select %52, %39, %53 : vector<2x16xi1>, vector<2x16xf32>
        %cst_32 = arith.constant dense<0.000000e+00> : vector<2xf32>
        %55 = vector.multi_reduction <add>, %54, %cst_32 [1] : vector<2x16xf32> to vector<2xf32>
        %56 = vector.shape_cast %55 : vector<2xf32> to vector<2x1xf32>
        %57 = arith.subf %49, %56 : vector<2x1xf32>
        %58 = vector.shape_cast %57 : vector<2x1xf32> to vector<1x2x1xf32>
        %cst_33 = arith.constant dense<0.000000e+00> : vector<1xf32>
        %59 = vector.multi_reduction <add>, %58, %cst_33 [1, 2] : vector<1x2x1xf32> to vector<1xf32>
        %60 = vector.shape_cast %59 : vector<1xf32> to vector<1x1x1xf32>
        %61 = vector.extract %60[0, 0, 0] : f32 from vector<1x1x1xf32>
        %cst_34 = arith.constant 2.000000e+00 : f32
        %62 = arith.divf %61, %cst_34 : f32
        %cst_35 = arith.constant 0.000000e+00 : f32
        %63 = arith.addf %cst_35, %62 : f32
        %c0_36 = arith.constant 0 : index
        %c0_37 = arith.constant 0 : index
        %64 = vector.load %arg5[%c0_36, %c0_37] : memref<2x16xf32, #tpu.memory_space<vmem>>, vector<2x16xf32>
        %c0_38 = arith.constant 0 : index
        %c0_39 = arith.constant 0 : index
        %65 = vector.load %arg8[%c0_38, %c0_39] : memref<2x16xf32, #tpu.memory_space<vmem>>, vector<2x16xf32>
        %cst_40 = arith.constant 1.000000e+00 : f32
        %66 = vector.broadcast %cst_40 : f32 to vector<2x16xf32>
        %67 = arith.addf %66, %65 : vector<2x16xf32>
        %68 = arith.mulf %64, %64 : vector<2x16xf32>
        %69 = arith.subf %67, %68 : vector<2x16xf32>
        %70 = math.exp %65 : vector<2x16xf32>
        %71 = arith.subf %69, %70 : vector<2x16xf32>
        %72 = vector.shape_cast %71 : vector<2x16xf32> to vector<1x2x16xf32>
        %cst_41 = arith.constant dense<0.000000e+00> : vector<1xf32>
        %73 = vector.multi_reduction <add>, %72, %cst_41 [1, 2] : vector<1x2x16xf32> to vector<1xf32>
        %74 = vector.shape_cast %73 : vector<1xf32> to vector<1x1x1xf32>
        %75 = vector.extract %74[0, 0, 0] : f32 from vector<1x1x1xf32>
        %cst_42 = arith.constant -5.000000e-01 : f32
        %76 = arith.mulf %cst_42, %75 : f32
        %77 = arith.addf %38, %76 : f32
        %c0_43 = arith.constant 0 : index
        %c0_44 = arith.constant 0 : index
        %78 = vector.load %arg11[%c0_43, %c0_44] : memref<2x16xf32, #tpu.memory_space<vmem>>, vector<2x16xf32>
        %c0_45 = arith.constant 0 : index
        %c0_46 = arith.constant 0 : index
        %79 = vector.load %arg14[%c0_45, %c0_46] : memref<2x1xi32, #tpu.memory_space<vmem>>, vector<2x1xi32>
        %cst_47 = arith.constant dense<0xFF800000> : vector<2xf32>
        %80 = vector.multi_reduction <maximumf>, %78, %cst_47 [1] : vector<2x16xf32> to vector<2xf32>
        %81 = vector.shape_cast %80 : vector<2xf32> to vector<2x1xf32>
        %82 = vector.broadcast %81 : vector<2x1xf32> to vector<2x16xf32>
        %83 = arith.subf %78, %82 : vector<2x16xf32>
        %84 = math.exp %83 : vector<2x16xf32>
        %cst_48 = arith.constant dense<0.000000e+00> : vector<2xf32>
        %85 = vector.multi_reduction <add>, %84, %cst_48 [1] : vector<2x16xf32> to vector<2xf32>
        %86 = vector.shape_cast %85 : vector<2xf32> to vector<2x1xf32>
        %87 = math.log %86 : vector<2x1xf32>
        %88 = arith.addf %81, %87 : vector<2x1xf32>
        %89 = tpu.iota {dimensions = array<i32: 1>} : vector<2x16xi32>
        %90 = vector.broadcast %79 : vector<2x1xi32> to vector<2x16xi32>
        %91 = arith.cmpi eq, %89, %90 : vector<2x16xi32>
        %cst_49 = arith.constant 0.000000e+00 : f32
        %92 = vector.broadcast %cst_49 : f32 to vector<2x16xf32>
        %93 = arith.select %91, %78, %92 : vector<2x16xi1>, vector<2x16xf32>
        %cst_50 = arith.constant dense<0.000000e+00> : vector<2xf32>
        %94 = vector.multi_reduction <add>, %93, %cst_50 [1] : vector<2x16xf32> to vector<2xf32>
        %95 = vector.shape_cast %94 : vector<2xf32> to vector<2x1xf32>
        %96 = arith.subf %88, %95 : vector<2x1xf32>
        %97 = vector.shape_cast %96 : vector<2x1xf32> to vector<1x2x1xf32>
        %cst_51 = arith.constant dense<0.000000e+00> : vector<1xf32>
        %98 = vector.multi_reduction <add>, %97, %cst_51 [1, 2] : vector<1x2x1xf32> to vector<1xf32>
        %99 = vector.shape_cast %98 : vector<1xf32> to vector<1x1x1xf32>
        %100 = vector.extract %99[0, 0, 0] : f32 from vector<1x1x1xf32>
        %cst_52 = arith.constant 2.000000e+00 : f32
        %101 = arith.divf %100, %cst_52 : f32
        %102 = arith.addf %63, %101 : f32
        %c0_53 = arith.constant 0 : index
        %c0_54 = arith.constant 0 : index
        %103 = vector.load %arg6[%c0_53, %c0_54] : memref<2x16xf32, #tpu.memory_space<vmem>>, vector<2x16xf32>
        %c0_55 = arith.constant 0 : index
        %c0_56 = arith.constant 0 : index
        %104 = vector.load %arg9[%c0_55, %c0_56] : memref<2x16xf32, #tpu.memory_space<vmem>>, vector<2x16xf32>
        %cst_57 = arith.constant 1.000000e+00 : f32
        %105 = vector.broadcast %cst_57 : f32 to vector<2x16xf32>
        %106 = arith.addf %105, %104 : vector<2x16xf32>
        %107 = arith.mulf %103, %103 : vector<2x16xf32>
        %108 = arith.subf %106, %107 : vector<2x16xf32>
        %109 = math.exp %104 : vector<2x16xf32>
        %110 = arith.subf %108, %109 : vector<2x16xf32>
        %111 = vector.shape_cast %110 : vector<2x16xf32> to vector<1x2x16xf32>
        %cst_58 = arith.constant dense<0.000000e+00> : vector<1xf32>
        %112 = vector.multi_reduction <add>, %111, %cst_58 [1, 2] : vector<1x2x16xf32> to vector<1xf32>
        %113 = vector.shape_cast %112 : vector<1xf32> to vector<1x1x1xf32>
        %114 = vector.extract %113[0, 0, 0] : f32 from vector<1x1x1xf32>
        %cst_59 = arith.constant -5.000000e-01 : f32
        %115 = arith.mulf %cst_59, %114 : f32
        %116 = arith.addf %77, %115 : f32
        %c0_60 = arith.constant 0 : index
        %c0_61 = arith.constant 0 : index
        %117 = vector.load %arg12[%c0_60, %c0_61] : memref<2x16xf32, #tpu.memory_space<vmem>>, vector<2x16xf32>
        %c0_62 = arith.constant 0 : index
        %c0_63 = arith.constant 0 : index
        %118 = vector.load %arg15[%c0_62, %c0_63] : memref<2x1xi32, #tpu.memory_space<vmem>>, vector<2x1xi32>
        %cst_64 = arith.constant dense<0xFF800000> : vector<2xf32>
        %119 = vector.multi_reduction <maximumf>, %117, %cst_64 [1] : vector<2x16xf32> to vector<2xf32>
        %120 = vector.shape_cast %119 : vector<2xf32> to vector<2x1xf32>
        %121 = vector.broadcast %120 : vector<2x1xf32> to vector<2x16xf32>
        %122 = arith.subf %117, %121 : vector<2x16xf32>
        %123 = math.exp %122 : vector<2x16xf32>
        %cst_65 = arith.constant dense<0.000000e+00> : vector<2xf32>
        %124 = vector.multi_reduction <add>, %123, %cst_65 [1] : vector<2x16xf32> to vector<2xf32>
        %125 = vector.shape_cast %124 : vector<2xf32> to vector<2x1xf32>
        %126 = math.log %125 : vector<2x1xf32>
        %127 = arith.addf %120, %126 : vector<2x1xf32>
        %128 = tpu.iota {dimensions = array<i32: 1>} : vector<2x16xi32>
        %129 = vector.broadcast %118 : vector<2x1xi32> to vector<2x16xi32>
        %130 = arith.cmpi eq, %128, %129 : vector<2x16xi32>
        %cst_66 = arith.constant 0.000000e+00 : f32
        %131 = vector.broadcast %cst_66 : f32 to vector<2x16xf32>
        %132 = arith.select %130, %117, %131 : vector<2x16xi1>, vector<2x16xf32>
        %cst_67 = arith.constant dense<0.000000e+00> : vector<2xf32>
        %133 = vector.multi_reduction <add>, %132, %cst_67 [1] : vector<2x16xf32> to vector<2xf32>
        %134 = vector.shape_cast %133 : vector<2xf32> to vector<2x1xf32>
        %135 = arith.subf %127, %134 : vector<2x1xf32>
        %136 = vector.shape_cast %135 : vector<2x1xf32> to vector<1x2x1xf32>
        %cst_68 = arith.constant dense<0.000000e+00> : vector<1xf32>
        %137 = vector.multi_reduction <add>, %136, %cst_68 [1, 2] : vector<1x2x1xf32> to vector<1xf32>
        %138 = vector.shape_cast %137 : vector<1xf32> to vector<1x1x1xf32>
        %139 = vector.extract %138[0, 0, 0] : f32 from vector<1x1x1xf32>
        %cst_69 = arith.constant 2.000000e+00 : f32
        %140 = arith.divf %139, %cst_69 : f32
        %141 = arith.addf %102, %140 : f32
        %cst_70 = arith.constant 0.000000e+00 : f32
        %142 = vector.broadcast %cst_70 : f32 to vector<8x128xf32>
        %143 = arith.addf %18, %141 : f32
        %cst_71 = arith.constant 5.000000e-01 : f32
        %144 = arith.mulf %116, %cst_71 : f32
        %145 = arith.addf %143, %144 : f32
        %146 = vector.broadcast %145 : f32 to vector<8x128xf32>
        %147 = arith.addf %142, %146 : vector<8x128xf32>
        %c0_72 = arith.constant 0 : index
        %c0_73 = arith.constant 0 : index
        %148 = vector.load %arg16[%c0_72, %c0_73] : memref<8x128xf32, #tpu.memory_space<vmem>>, vector<8x128xf32>
        tpu.vector_store %arg16[%c0_72, %c0_73], %147 {strides = array<i32>} : memref<8x128xf32, #tpu.memory_space<vmem>>, vector<8x128xf32>,
      } else {
      }
      %c0_i32_15 = arith.constant 0 : i32
      %22 = arith.cmpi ne, %arg0, %c0_i32_15 : i32
      %23 = arith.extui %22 : i1 to i32
      %c0_i32_16 = arith.constant 0 : i32
      %24 = arith.cmpi ne, %23, %c0_i32_16 : i32
      scf.if %24 {
        %cst_17 = arith.constant 0.000000e+00 : f32
        %25 = vector.broadcast %cst_17 : f32 to vector<8x128xf32>
        %26 = vector.broadcast %18 : f32 to vector<8x128xf32>
        %27 = arith.addf %25, %26 : vector<8x128xf32>
        %c0_18 = arith.constant 0 : index
        %c0_19 = arith.constant 0 : index
        %28 = vector.load %arg16[%c0_18, %c0_19] : memref<8x128xf32, #tpu.memory_space<vmem>>, vector<8x128xf32>
        tpu.vector_store %arg16[%c0_18, %c0_19], %27 {strides = array<i32>} : memref<8x128xf32, #tpu.memory_space<vmem>>, vector<8x128xf32>,
      } else {
      }
    } else {
    }
    return
  }
  func.func @transform_0(%arg0: i32, %arg1: i32) -> (i32, i32) {
    %c1_i32 = arith.constant 1 : i32
    %0 = arith.muli %arg0, %c1_i32 : i32
    %1 = arith.addi %0, %arg1 : i32
    %c0_i32 = arith.constant 0 : i32
    %c0_i32_0 = arith.constant 0 : i32
    return %c0_i32, %1 : i32, i32
  }
  func.func @transform_1(%arg0: i32, %arg1: i32) -> (i32, i32) {
    %c1_i32 = arith.constant 1 : i32
    %0 = arith.muli %arg0, %c1_i32 : i32
    %1 = arith.addi %0, %arg1 : i32
    %c0_i32 = arith.constant 0 : i32
    %c0_i32_0 = arith.constant 0 : i32
    return %c0_i32, %1 : i32, i32
  }
  func.func @transform_2(%arg0: i32, %arg1: i32) -> (i32, i32) {
    %c0_i32 = arith.constant 0 : i32
    %c0_i32_0 = arith.constant 0 : i32
    %c0_i32_1 = arith.constant 0 : i32
    return %c0_i32, %c0_i32_0 : i32, i32
  }
  func.func @transform_3(%arg0: i32, %arg1: i32) -> (i32, i32) {
    %c0_i32 = arith.constant 0 : i32
    %c0_i32_0 = arith.constant 0 : i32
    %c0_i32_1 = arith.constant 0 : i32
    return %c0_i32, %c0_i32_0 : i32, i32
  }
  func.func @transform_4(%arg0: i32, %arg1: i32) -> (i32, i32) {
    %c0_i32 = arith.constant 0 : i32
    %c0_i32_0 = arith.constant 0 : i32
    %c0_i32_1 = arith.constant 0 : i32
    return %c0_i32, %c0_i32_0 : i32, i32
  }
  func.func @transform_5(%arg0: i32, %arg1: i32) -> (i32, i32) {
    %c0_i32 = arith.constant 0 : i32
    %c0_i32_0 = arith.constant 0 : i32
    %c0_i32_1 = arith.constant 0 : i32
    return %c0_i32, %c0_i32_0 : i32, i32
  }
  func.func @transform_6(%arg0: i32, %arg1: i32) -> (i32, i32) {
    %c0_i32 = arith.constant 0 : i32
    %c0_i32_0 = arith.constant 0 : i32
    %c0_i32_1 = arith.constant 0 : i32
    return %c0_i32, %c0_i32_0 : i32, i32
  }
  func.func @transform_7(%arg0: i32, %arg1: i32) -> (i32, i32) {
    %c0_i32 = arith.constant 0 : i32
    %c0_i32_0 = arith.constant 0 : i32
    %c0_i32_1 = arith.constant 0 : i32
    return %c0_i32, %c0_i32_0 : i32, i32
  }
  func.func @transform_8(%arg0: i32, %arg1: i32) -> (i32, i32) {
    %c0_i32 = arith.constant 0 : i32
    %c0_i32_0 = arith.constant 0 : i32
    %c0_i32_1 = arith.constant 0 : i32
    return %c0_i32, %c0_i32_0 : i32, i32
  }
  func.func @transform_9(%arg0: i32, %arg1: i32) -> (i32, i32) {
    %c0_i32 = arith.constant 0 : i32
    %c0_i32_0 = arith.constant 0 : i32
    %c0_i32_1 = arith.constant 0 : i32
    return %c0_i32, %c0_i32_0 : i32, i32
  }
  func.func @transform_10(%arg0: i32, %arg1: i32) -> (i32, i32) {
    %c0_i32 = arith.constant 0 : i32
    %c0_i32_0 = arith.constant 0 : i32
    %c0_i32_1 = arith.constant 0 : i32
    return %c0_i32, %c0_i32_0 : i32, i32
  }
  func.func @transform_11(%arg0: i32, %arg1: i32) -> (i32, i32) {
    %c0_i32 = arith.constant 0 : i32
    %c0_i32_0 = arith.constant 0 : i32
    %c0_i32_1 = arith.constant 0 : i32
    return %c0_i32, %c0_i32_0 : i32, i32
  }
  func.func @transform_12(%arg0: i32, %arg1: i32) -> (i32, i32) {
    %c0_i32 = arith.constant 0 : i32
    %c0_i32_0 = arith.constant 0 : i32
    %c0_i32_1 = arith.constant 0 : i32
    return %c0_i32, %c0_i32_0 : i32, i32
  }
  func.func @transform_13(%arg0: i32, %arg1: i32) -> (i32, i32) {
    %c0_i32 = arith.constant 0 : i32
    %c0_i32_0 = arith.constant 0 : i32
    %c0_i32_1 = arith.constant 0 : i32
    return %c0_i32, %c0_i32_0 : i32, i32
  }
  func.func @transform_14(%arg0: i32, %arg1: i32) -> (i32, i32) {
    %c0_i32 = arith.constant 0 : i32
    %c0_i32_0 = arith.constant 0 : i32
    return %arg0, %c0_i32 : i32, i32
  }
}

</mosaic_0001>

<llo_original>
// kernel: tpu_custom_call.1
$region0: #{tpu_custom_call.1}
  #allocation0 [shape = 'u32[]', space=smem, size = 0x4, offset = 0x4, fixed_abs, tag = 'smem constant byte address 0x4 - core index']
  #allocation1 [shape = 'u32[144,128]{1,0:T(1,128)}', space=vmem, size = 0x12000, scoped, tag = 'internal scratch']
  #allocation2 [shape = 'f32[2,32]{1,0:T(2,128)}', space=vmem, size = 0x400, scoped, tag = 'scratch operand']
  %s0 = inlined_call_operand.vmem [shape: f32[2,32], index: 0, kind: input, shape index: {}]
  %s1 = inlined_call_operand.vmem [shape: f32[2,32], index: 1, kind: input, shape index: {}]
  %s2 = inlined_call_operand.vmem [shape: f32[2,16], index: 2, kind: input, shape index: {}]
  %s3 = inlined_call_operand.vmem [shape: f32[2,16], index: 3, kind: input, shape index: {}]
  %s4 = inlined_call_operand.vmem [shape: f32[2,16], index: 4, kind: input, shape index: {}]
  %s5 = inlined_call_operand.vmem [shape: f32[2,16], index: 5, kind: input, shape index: {}]
  %s6 = inlined_call_operand.vmem [shape: f32[2,16], index: 6, kind: input, shape index: {}]
  %s7 = inlined_call_operand.vmem [shape: f32[2,16], index: 7, kind: input, shape index: {}]
  %s8 = inlined_call_operand.vmem [shape: f32[2,16], index: 8, kind: input, shape index: {}]
  %s9 = inlined_call_operand.vmem [shape: f32[2,16], index: 9, kind: input, shape index: {}]
  %s10 = inlined_call_operand.vmem [shape: f32[2,16], index: 10, kind: input, shape index: {}]
  %s11 = inlined_call_operand.vmem [shape: s32[2,1], index: 11, kind: input, shape index: {}]
  %s12 = inlined_call_operand.vmem [shape: s32[2,1], index: 12, kind: input, shape index: {}]
  %s13 = inlined_call_operand.vmem [shape: s32[2,1], index: 13, kind: input, shape index: {}]
  %s14 = inlined_call_operand.hbm [shape: f32[8,128], index: 14, kind: output, shape index: {}]
  %s15 = sld [smem:[#allocation0]]
  $region82: #{tpu_custom_call.1} parent=0
    _
  %s17 = ssub.s32 1, %s15
  %s18 = scalar_select 0, %s17, %s15
  $region1: #{tpu_custom_call.1} parent=0
    #allocation3 [shape = 'u8[4096]{0}', space=vmem, size = 0x1000, scoped, tag = 'output window, operand 0, single buffered']
    #allocation4 [shape = 's32[1]{0}', space=sflag, size = 0x4, scoped, tag = 'scoped memory for tpu_custom_call.1']
    %19 = vsyncpa [#allocation4], 0
    // Predicated region
    $region2: #{tpu_custom_call.1} parent=1 // pred_check
      _
    $region3: #{tpu_custom_call.1} parent=1 // pred_check_branch
      %21 = sbr.rel (0) target = $region5
    $region4: #{tpu_custom_call.1} parent=1 // pred_region
      %s22 = sadd.s32 0, 0
      %p23 = scmp.lt.s32.totalorder %s22, 0
      %s24 = scalar_select %p23, %s22, 0
      %s25 = smul.addr %s24, 2
      %s26 = scalar_lea.vmem %s0, %s25
      %s27 = sadd.s32 0, 0
    $region5: #{tpu_custom_call.1} parent=1 // pred_fallthru
      _
    // Predicated region
    $region6: #{tpu_custom_call.1} parent=1 // pred_check
      _
    $region7: #{tpu_custom_call.1} parent=1 // pred_check_branch
      %29 = sbr.rel (0) target = $region9
    $region8: #{tpu_custom_call.1} parent=1 // pred_region
      %s30 = sadd.s32 0, 0
      %p31 = scmp.lt.s32.totalorder %s30, 0
      %s32 = scalar_select %p31, %s30, 0
      %s33 = smul.addr %s32, 2
      %s34 = scalar_lea.vmem %s1, %s33
      %s35 = sadd.s32 0, 0
    $region9: #{tpu_custom_call.1} parent=1 // pred_fallthru
      _
    // Predicated region
    $region10: #{tpu_custom_call.1} parent=1 // pred_check
      _
    $region11: #{tpu_custom_call.1} parent=1 // pred_check_branch
      %37 = sbr.rel (0) target = $region13
    $region12: #{tpu_custom_call.1} parent=1 // pred_region
      _
    $region13: #{tpu_custom_call.1} parent=1 // pred_fallthru
      _
    // Predicated region
    $region14: #{tpu_custom_call.1} parent=1 // pred_check
      _
    $region15: #{tpu_custom_call.1} parent=1 // pred_check_branch
      %39 = sbr.rel (0) target = $region17
    $region16: #{tpu_custom_call.1} parent=1 // pred_region
      _
    $region17: #{tpu_custom_call.1} parent=1 // pred_fallthru
      _
    // Predicated region
    $region18: #{tpu_custom_call.1} parent=1 // pred_check
      _
    $region19: #{tpu_custom_call.1} parent=1 // pred_check_branch
      %41 = sbr.rel (0) target = $region21
    $region20: #{tpu_custom_call.1} parent=1 // pred_region
      _
    $region21: #{tpu_custom_call.1} parent=1 // pred_fallthru
      _
    // Predicated region
    $region22: #{tpu_custom_call.1} parent=1 // pred_check
      _
    $region23: #{tpu_custom_call.1} parent=1 // pred_check_branch
      %43 = sbr.rel (0) target = $region25
    $region24: #{tpu_custom_call.1} parent=1 // pred_region
      _
    $region25: #{tpu_custom_call.1} parent=1 // pred_fallthru
      _
    // Predicated region
    $region26: #{tpu_custom_call.1} parent=1 // pred_check
      _
    $region27: #{tpu_custom_call.1} parent=1 // pred_check_branch
      %45 = sbr.rel (0) target = $region29
    $region28: #{tpu_custom_call.1} parent=1 // pred_region
      _
    $region29: #{tpu_custom_call.1} parent=1 // pred_fallthru
      _
    // Predicated region
    $region30: #{tpu_custom_call.1} parent=1 // pred_check
      _
    $region31: #{tpu_custom_call.1} parent=1 // pred_check_branch
      %47 = sbr.rel (0) target = $region33
    $region32: #{tpu_custom_call.1} parent=1 // pred_region
      _
    $region33: #{tpu_custom_call.1} parent=1 // pred_fallthru
      _
    // Predicated region
    $region34: #{tpu_custom_call.1} parent=1 // pred_check
      _
    $region35: #{tpu_custom_call.1} parent=1 // pred_check_branch
      %49 = sbr.rel (0) target = $region37
    $region36: #{tpu_custom_call.1} parent=1 // pred_region
      _
    $region37: #{tpu_custom_call.1} parent=1 // pred_fallthru
      _
    // Predicated region
    $region38: #{tpu_custom_call.1} parent=1 // pred_check
      _
    $region39: #{tpu_custom_call.1} parent=1 // pred_check_branch
      %51 = sbr.rel (0) target = $region41
    $region40: #{tpu_custom_call.1} parent=1 // pred_region
      _
    $region41: #{tpu_custom_call.1} parent=1 // pred_fallthru
      _
    // Predicated region
    $region42: #{tpu_custom_call.1} parent=1 // pred_check
      _
    $region43: #{tpu_custom_call.1} parent=1 // pred_check_branch
      %53 = sbr.rel (0) target = $region45
    $region44: #{tpu_custom_call.1} parent=1 // pred_region
      _
    $region45: #{tpu_custom_call.1} parent=1 // pred_fallthru
      _
    // Predicated region
    $region46: #{tpu_custom_call.1} parent=1 // pred_check
      _
    $region47: #{tpu_custom_call.1} parent=1 // pred_check_branch
      %55 = sbr.rel (0) target = $region49
    $region48: #{tpu_custom_call.1} parent=1 // pred_region
      _
    $region49: #{tpu_custom_call.1} parent=1 // pred_fallthru
      _
    // Predicated region
    $region50: #{tpu_custom_call.1} parent=1 // pred_check
      _
    $region51: #{tpu_custom_call.1} parent=1 // pred_check_branch
      %57 = sbr.rel (0) target = $region53
    $region52: #{tpu_custom_call.1} parent=1 // pred_region
      _
    $region53: #{tpu_custom_call.1} parent=1 // pred_fallthru
      _
    // Predicated region
    $region54: #{tpu_custom_call.1} parent=1 // pred_check
      _
    $region55: #{tpu_custom_call.1} parent=1 // pred_check_branch
      %59 = sbr.rel (0) target = $region57
    $region56: #{tpu_custom_call.1} parent=1 // pred_region
      _
    $region57: #{tpu_custom_call.1} parent=1 // pred_fallthru
      _
    %s60 = sadd.s32 0, 0
    %p61 = scmp.lt.s32.totalorder %s60, 0
    %s62 = scalar_select %p61, %s60, 0
    %s63 = smul.addr %s62, 2
    %s64 = scalar_lea.vmem %s0, %s63
    %s65 = sadd.s32 0, 0
    %p66 = scmp.lt.s32.totalorder %s65, 0
    %s67 = scalar_select %p66, %s65, 0
    %s68 = smul.addr %s67, 2
    %s69 = scalar_lea.vmem %s1, %s68
    %s70 = sadd.s32 0, 0
    %p71 = scmp.lt.s32.totalorder %s70, 0
    %s72 = scalar_select %p71, %s70, 0
    %s73 = smul.addr %s72, 2
    %s74 = scalar_lea.vmem %s0, %s73
    %s75 = sadd.s32 0, 0
    %s76 = sadd.s32 0, 0
    %p77 = scmp.lt.s32.totalorder %s76, 0
    %s78 = scalar_select %p77, %s76, 0
    %s79 = smul.addr %s78, 2
    %s80 = scalar_lea.vmem %s1, %s79
    %s81 = sadd.s32 0, 0
    %p82 = scmp.eq.s32.totalorder 0, 0
    // Predicated region
    $region58: #{tpu_custom_call.1} parent=1 // pred_check
      %p83 = pneg %p82
    $region59: #{tpu_custom_call.1} parent=1 // pred_check_branch
      %85 = sbr.rel (%p83) target = $region61
    $region60: #{tpu_custom_call.1} parent=1 // pred_region
      %vm86 = vcmask 254976
      %87 = vst.msk [vmem:[#allocation2] sm:$0x3] %vm86, 0.0
    $region61: #{tpu_custom_call.1} parent=1 // pred_fallthru
      _
    %v88 = vld [vmem:[%s80] sm:$0x3]
    %v89 = vld [vmem:[%s74] sm:$0x3]
    %v90 = vsub.f32 %v88, %v89
    %v91 = vld [vmem:[#allocation2] sm:$0x3]
    %v92 = vmul.f32 %v90, %v90
    %v93 = vadd.f32 %v91, %v92
    %vm94 = vcmask 254976
    %95 = vst.msk [vmem:[#allocation2] sm:$0x3] %vm94, %v93
    // Predicated region
    $region62: #{tpu_custom_call.1} parent=1 // pred_check
      %p96 = pneg %p82
    $region63: #{tpu_custom_call.1} parent=1 // pred_check_branch
      %98 = sbr.rel (%p96) target = $region65
    $region64: #{tpu_custom_call.1} parent=1 // pred_region
      %v99 = vld [vmem:[#allocation2] sm:$0x3]
      %v100 = vsel %vm94, %v99, 0.0
      %101 = vadd.xlane.f32.xlu0 %v100
      %v102 = vpop.xlane.xlu0 %101
      %v103 = vrot.slane %v102, 4
      %v104 = vadd.f32 %v102, %v103
      %v105 = vrot.slane %v104, 2
      %v106 = vadd.f32 %v104, %v105
      %v107 = vrot.slane %v106, 1
      %v108 = vadd.f32 %v106, %v107
      %s109 = vtos %v108
      %s110 = smul.f32 %s109, 0.015625
      %p111 = scmp.eq.s32.totalorder 0, 0
      // Predicated region
      $region66: #{tpu_custom_call.1} parent=64 // pred_check
        %p112 = pneg %p111
      $region67: #{tpu_custom_call.1} parent=64 // pred_check_branch
        %114 = sbr.rel (%p112) target = $region69
      $region68: #{tpu_custom_call.1} parent=64 // pred_region
        %v115 = vld [vmem:[%s2] sm:$0x3]
        %v116 = vld [vmem:[%s5] sm:$0x3]
        %v117 = vadd.f32 %v116, 1.0
        %v118 = vmul.f32 %v115, %v115
        %v119 = vsub.f32 %v117, %v118
        %v120 = vmul.f32 %v116, 1.442695
        %v121 = vpow.pop %v120
        %v122 = vsub.f32 %v119, %v121
        %vm123 = vcmask 123904
        %v124 = vsel %vm123, %v122, 0.0
        %125 = vadd.xlane.f32.xlu0 %v124
        %v126 = vpop.xlane.xlu0 %125
        %v127 = vrot.slane %v126, 4
        %v128 = vadd.f32 %v126, %v127
        %v129 = vrot.slane %v128, 2
        %v130 = vadd.f32 %v128, %v129
        %v131 = vrot.slane %v130, 1
        %v132 = vadd.f32 %v130, %v131
        %s133 = vtos %v132
        %s134 = smul.f32 %s133, -0.5
        %s135 = sadd.f32 %s134, 0.0
        %v136 = vld [vmem:[%s8] sm:$0x3]
        %v137 = vld [vmem:[%s11] sm:$0x3]
        %v138 = vsel %vm123, %v136, -inf
        %139 = vmax.xlane.f32.xlu0 %v138
        %v140 = vpop.xlane.xlu0 %139
        %v141 = vsub.f32 %v136, %v140
        %v142 = vmul.f32 %v141, 1.442695
        %v143 = vpow.pop %v142
        %v144 = vsel %vm123, %v143, 0.0
        %145 = vadd.xlane.f32.xlu0 %v144
        %v146 = vpop.xlane.xlu0 %145
        %v147 = vlog2.pop %v146
        %v148 = vmul.f32 %v147, 0.6931472
        %v149 = vadd.f32 %v140, %v148
        %v150 = vlaneseq
        %v151 = vand.u32 %v150, 127
        %152 = vset.pattern.permute.xlu0 0
        %153 = vperm.xlu0 %152, %v137
        %v154 = vpop.permute.xlu0 %153
        %vm155 = vcmp.eq.s32.totalorder %v151, %v154
        %v156 = vsel %vm155, %v136, 0.0
        %v157 = vsel %vm123, %v156, 0.0
        %158 = vadd.xlane.f32.xlu0 %v157
        %v159 = vpop.xlane.xlu0 %158
        %v160 = vsub.f32 %v149, %v159
        %vm161 = vcmask 1024
        %v162 = vsel %vm161, %v160, 0.0
        %163 = vadd.xlane.f32.xlu0 %v162
        %v164 = vpop.xlane.xlu0 %163
        %v165 = vrot.slane %v164, 4
        %v166 = vadd.f32 %v164, %v165
        %v167 = vrot.slane %v166, 2
        %v168 = vadd.f32 %v166, %v167
        %v169 = vrot.slane %v168, 1
        %v170 = vadd.f32 %v168, %v169
        %s171 = vtos %v170
        %v172 = vrcp.pop 2.0
        %s173 = vtos %v172
        %s174 = smul.f32 %s171, %s173
        %s175 = sadd.f32 %s174, 0.0
        %v176 = vld [vmem:[%s3] sm:$0x3]
        %v177 = vld [vmem:[%s6] sm:$0x3]
        %v178 = vadd.f32 %v177, 1.0
        %v179 = vmul.f32 %v176, %v176
        %v180 = vsub.f32 %v178, %v179
        %v181 = vmul.f32 %v177, 1.442695
        %v182 = vpow.pop %v181
        %v183 = vsub.f32 %v180, %v182
        %v184 = vsel %vm123, %v183, 0.0
        %185 = vadd.xlane.f32.xlu0 %v184
        %v186 = vpop.xlane.xlu0 %185
        %v187 = vrot.slane %v186, 4
        %v188 = vadd.f32 %v186, %v187
        %v189 = vrot.slane %v188, 2
        %v190 = vadd.f32 %v188, %v189
        %v191 = vrot.slane %v190, 1
        %v192 = vadd.f32 %v190, %v191
        %s193 = vtos %v192
        %s194 = smul.f32 %s193, -0.5
        %s195 = sadd.f32 %s135, %s194
        %v196 = vld [vmem:[%s9] sm:$0x3]
        %v197 = vld [vmem:[%s12] sm:$0x3]
        %v198 = vsel %vm123, %v196, -inf
        %199 = vmax.xlane.f32.xlu0 %v198
        %v200 = vpop.xlane.xlu0 %199
        %v201 = vsub.f32 %v196, %v200
        %v202 = vmul.f32 %v201, 1.442695
        %v203 = vpow.pop %v202
        %v204 = vsel %vm123, %v203, 0.0
        %205 = vadd.xlane.f32.xlu0 %v204
        %v206 = vpop.xlane.xlu0 %205
        %v207 = vlog2.pop %v206
        %v208 = vmul.f32 %v207, 0.6931472
        %v209 = vadd.f32 %v200, %v208
        %210 = vset.pattern.permute.xlu0 0
        %211 = vperm.xlu0 %210, %v197
        %v212 = vpop.permute.xlu0 %211
        %vm213 = vcmp.eq.s32.totalorder %v151, %v212
        %v214 = vsel %vm213, %v196, 0.0
        %v215 = vsel %vm123, %v214, 0.0
        %216 = vadd.xlane.f32.xlu0 %v215
        %v217 = vpop.xlane.xlu0 %216
        %v218 = vsub.f32 %v209, %v217
        %v219 = vsel %vm161, %v218, 0.0
        %220 = vadd.xlane.f32.xlu0 %v219
        %v221 = vpop.xlane.xlu0 %220
        %v222 = vrot.slane %v221, 4
        %v223 = vadd.f32 %v221, %v222
        %v224 = vrot.slane %v223, 2
        %v225 = vadd.f32 %v223, %v224
        %v226 = vrot.slane %v225, 1
        %v227 = vadd.f32 %v225, %v226
        %s228 = vtos %v227
        %v229 = vrcp.pop 2.0
        %s230 = vtos %v229
        %s231 = smul.f32 %s228, %s230
        %s232 = sadd.f32 %s175, %s231
        %v233 = vld [vmem:[%s4] sm:$0x3]
        %v234 = vld [vmem:[%s7] sm:$0x3]
        %v235 = vadd.f32 %v234, 1.0
        %v236 = vmul.f32 %v233, %v233
        %v237 = vsub.f32 %v235, %v236
        %v238 = vmul.f32 %v234, 1.442695
        %v239 = vpow.pop %v238
        %v240 = vsub.f32 %v237, %v239
        %v241 = vsel %vm123, %v240, 0.0
        %242 = vadd.xlane.f32.xlu0 %v241
        %v243 = vpop.xlane.xlu0 %242
        %v244 = vrot.slane %v243, 4
        %v245 = vadd.f32 %v243, %v244
        %v246 = vrot.slane %v245, 2
        %v247 = vadd.f32 %v245, %v246
        %v248 = vrot.slane %v247, 1
        %v249 = vadd.f32 %v247, %v248
        %s250 = vtos %v249
        %s251 = smul.f32 %s250, -0.5
        %s252 = sadd.f32 %s195, %s251
        %v253 = vld [vmem:[%s10] sm:$0x3]
        %v254 = vld [vmem:[%s13] sm:$0x3]
        %v255 = vsel %vm123, %v253, -inf
        %256 = vmax.xlane.f32.xlu0 %v255
        %v257 = vpop.xlane.xlu0 %256
        %v258 = vsub.f32 %v253, %v257
        %v259 = vmul.f32 %v258, 1.442695
        %v260 = vpow.pop %v259
        %v261 = vsel %vm123, %v260, 0.0
        %262 = vadd.xlane.f32.xlu0 %v261
        %v263 = vpop.xlane.xlu0 %262
        %v264 = vlog2.pop %v263
        %v265 = vmul.f32 %v264, 0.6931472
        %v266 = vadd.f32 %v257, %v265
        %267 = vset.pattern.permute.xlu0 0
        %268 = vperm.xlu0 %267, %v254
        %v269 = vpop.permute.xlu0 %268
        %vm270 = vcmp.eq.s32.totalorder %v151, %v269
        %v271 = vsel %vm270, %v253, 0.0
        %v272 = vsel %vm123, %v271, 0.0
        %273 = vadd.xlane.f32.xlu0 %v272
        %v274 = vpop.xlane.xlu0 %273
        %v275 = vsub.f32 %v266, %v274
        %v276 = vsel %vm161, %v275, 0.0
        %277 = vadd.xlane.f32.xlu0 %v276
        %v278 = vpop.xlane.xlu0 %277
        %v279 = vrot.slane %v278, 4
        %v280 = vadd.f32 %v278, %v279
        %v281 = vrot.slane %v280, 2
        %v282 = vadd.f32 %v280, %v281
        %v283 = vrot.slane %v282, 1
        %v284 = vadd.f32 %v282, %v283
        %s285 = vtos %v284
        %v286 = vrcp.pop 2.0
        %s287 = vtos %v286
        %s288 = smul.f32 %s285, %s287
        %s289 = sadd.f32 %s232, %s288
        %s290 = sadd.f32 %s110, %s289
        %s291 = smul.f32 %s252, 0.5
        %s292 = sadd.f32 %s290, %s291
        %v293 = vstv %s292
        %v294 = vadd.f32 %v293, 0.0
        %295 = vst [vmem:[#allocation3] sm:$0xff] %v294
      $region69: #{tpu_custom_call.1} parent=64 // pred_fallthru
        _
      %p296 = scmp.ne.s32.totalorder 0, 0
      // Predicated region
      $region70: #{tpu_custom_call.1} parent=64 // pred_check
        %p297 = pneg %p296
      $region71: #{tpu_custom_call.1} parent=64 // pred_check_branch
        %299 = sbr.rel (%p297) target = $region73
      $region72: #{tpu_custom_call.1} parent=64 // pred_region
        %v300 = vstv %s110
        %v301 = vadd.f32 %v300, 0.0
        %302 = vst [vmem:[#allocation3] sm:$0xff] %v301
      $region73: #{tpu_custom_call.1} parent=64 // pred_fallthru
        _
    $region65: #{tpu_custom_call.1} parent=1 // pred_fallthru
      _
    // Predicated region
    $region74: #{tpu_custom_call.1} parent=1 // pred_check
      _
    $region75: #{tpu_custom_call.1} parent=1 // pred_check_branch
      %304 = sbr.rel (0) target = $region77
    $region76: #{tpu_custom_call.1} parent=1 // pred_region
      %s306 = ssub.s32 128, 128
      %307 = vsyncadd [#allocation4], %s306
      %s309 = sshll.u32 [#allocation3], 4
      %s310 = int_to_ptr.vmem [resolvable:$true] %s309
      %312 = dma.vmem_to_hbm [thread:$0]  %s310, 128, %s14, [#allocation4]
    $region77: #{tpu_custom_call.1} parent=1 // pred_fallthru
      _
    // Predicated region
    $region78: #{tpu_custom_call.1} parent=1 // pred_check
      _
    $region79: #{tpu_custom_call.1} parent=1 // pred_check_branch
      %314 = sbr.rel (0) target = $region81
    $region80: #{tpu_custom_call.1} parent=1 // pred_region
      %315 = dma.done [#allocation4], 128
    $region81: #{tpu_custom_call.1} parent=1 // pred_fallthru
      _
    %316 = vsyncpa [#allocation4], 1

</llo_original>
